<compile_context>
chip_gen: v7x
topology: tpu7x:2x2x1
jax: 0.10.0
libtpu: 0.0.40
codegen_flags: <defaults>
</compile_context>

<pallas_src>
import functools

import jax
import jax.numpy as jnp
from jax.experimental import pallas as pl
from jax.experimental.pallas import tpu as pltpu


def _round_up(x, m):
    return ((x + m - 1) // m) * m


def mf_kernel(uid_ref, sid_ref,          # SMEM scalar prefetch: (B_pad,) int32 ids
              ub_ref, sb_ref,            # VMEM (1, TB) lane-dense bias tiles
              u_tbl, s_tbl,              # embedding tables, left in place (pl.ANY)
              out_ref,                   # VMEM (1, TB) lane-dense output tile
              ue_buf, se_buf,            # VMEM (TB, D) gather scratch
              sems):                     # DMA semaphores, shape (2,)
    tile = pl.program_id(0)
    tb = ue_buf.shape[0]
    base = tile * tb

    # Fused embedding gather: one row DMA per (sample, table) straight from
    # the tables into VMEM scratch.  Issue all 2*TB copies before any wait so
    # the row DMAs overlap each other across the whole step.
    @pl.loop(0, tb)
    def _issue(r):
        uid = uid_ref[base + r]
        sid = sid_ref[base + r]
        pltpu.make_async_copy(u_tbl.at[pl.ds(uid, 1)], ue_buf.at[pl.ds(r, 1)],
                              sems.at[0]).start()
        pltpu.make_async_copy(s_tbl.at[pl.ds(sid, 1)], se_buf.at[pl.ds(r, 1)],
                              sems.at[1]).start()

    # Drain: one wait per issued copy.  Only the descriptor's transfer size
    # matters for semaphore accounting; it is one row, identical to every
    # issued copy, so waits and completions balance exactly (no deadlock).
    @pl.loop(0, tb)
    def _drain(r):
        pltpu.make_async_copy(u_tbl.at[pl.ds(0, 1)], ue_buf.at[pl.ds(0, 1)],
                              sems.at[0]).wait()
        pltpu.make_async_copy(s_tbl.at[pl.ds(0, 1)], se_buf.at[pl.ds(0, 1)],
                              sems.at[1]).wait()

    # Per-sample dot product.  Reduce over D on the sublane axis so the result
    # is lane-dense (1, TB): the transpose runs on the XLU (separate issue slot
    # from the VPU multiply) and the final add/store is a full-vreg store.
    prod = ue_buf[...] * se_buf[...]                                 # (TB, D) VPU
    dot_row = jnp.sum(jnp.transpose(prod), axis=0, keepdims=True)    # (1, TB)
    out_ref[...] = dot_row + ub_ref[...] + sb_ref[...]


@functools.partial(jax.jit, static_argnames=("block_b",))
def matrix_factorisation_forward(params, user_ids, show_ids, *, block_b=512):
    u_tbl = params["user_embeddings"]      # (n_users, D) f32
    s_tbl = params["show_embeddings"]      # (n_shows, D) f32
    D = u_tbl.shape[1]
    B = int(user_ids.shape[0])

    # Batch tiling: one tile for small B (block == full array, so the (8,128)
    # divisibility rule does not apply), otherwise 128-aligned lane-dense tiles.
    if B <= block_b:
        TB = _round_up(B, 8)
    else:
        TB = _round_up(block_b, 128)
    B_pad = _round_up(B, TB)
    num_tiles = B_pad // TB

    uid = jnp.asarray(user_ids, jnp.int32)
    sid = jnp.asarray(show_ids, jnp.int32)
    if B_pad != B:
        pad = B_pad - B
        uid = jnp.concatenate([uid, jnp.zeros((pad,), jnp.int32)])
        sid = jnp.concatenate([sid, jnp.zeros((pad,), jnp.int32)])

    # Tiny bias gathers (4 bytes/sample) stay in XLA but are passed lane-dense.
    ub_row = params["user_bias"].reshape(-1)[uid].reshape(1, B_pad)
    sb_row = params["show_bias"].reshape(-1)[sid].reshape(1, B_pad)

    grid_spec = pltpu.PrefetchScalarGridSpec(
        num_scalar_prefetch=2,
        grid=(num_tiles,),
        in_specs=[
            pl.BlockSpec((1, TB), lambda i, uid_r, sid_r: (0, i)),   # user bias
            pl.BlockSpec((1, TB), lambda i, uid_r, sid_r: (0, i)),   # show bias
            pl.BlockSpec(memory_space=pl.ANY),                       # user table
            pl.BlockSpec(memory_space=pl.ANY),                       # show table
        ],
        out_specs=pl.BlockSpec((1, TB), lambda i, uid_r, sid_r: (0, i)),
        scratch_shapes=[
            pltpu.VMEM((TB, D), jnp.float32),
            pltpu.VMEM((TB, D), jnp.float32),
            pltpu.SemaphoreType.DMA((2,)),
        ],
    )

    bytes_accessed = 2 * B_pad * D * 4 + 3 * B_pad * 4 + 2 * B_pad * 4
    out = pl.pallas_call(
        mf_kernel,
        out_shape=jax.ShapeDtypeStruct((1, B_pad), jnp.float32),
        grid_spec=grid_spec,
        compiler_params=pltpu.CompilerParams(
            dimension_semantics=("parallel",)),   # each tile is self-contained
        cost_estimate=pl.CostEstimate(
            flops=2 * B_pad * D, transcendentals=0,
            bytes_accessed=bytes_accessed),
    )(uid, sid, ub_row, sb_row, u_tbl, s_tbl)

    pred = out[0, :B]            # (B,)
    return jnp.squeeze(pred)     # torch .squeeze(): () when B == 1, (B,) otherwise


def init_params(key, n_users, n_shows, embedding_dim):
    # nn.Embedding default init: weights ~ N(0, 1)
    k1, k2, k3, k4 = jax.random.split(key, 4)
    return {
        "user_embeddings": jax.random.normal(k1, (n_users, embedding_dim), jnp.float32),
        "show_embeddings": jax.random.normal(k2, (n_shows, embedding_dim), jnp.float32),
        "user_bias": jax.random.normal(k3, (n_users, 1), jnp.float32),
        "show_bias": jax.random.normal(k4, (n_shows, 1), jnp.float32),
    }


if __name__ == "__main__":
    key = jax.random.PRNGKey(0)
    n_users, n_shows, embedding_dim = 32, 48, 32
    batch = 8

    pkey, ukey, skey = jax.random.split(key, 3)
    params = init_params(pkey, n_users, n_shows, embedding_dim)
    user_ids = jax.random.randint(ukey, (batch,), 0, n_users, dtype=jnp.int32)
    show_ids = jax.random.randint(skey, (batch,), 0, n_shows, dtype=jnp.int32)

    pred = matrix_factorisation_forward(params, user_ids, show_ids)
    pred = jax.block_until_ready(pred)

    # Pure-JAX reference check (same math, no Pallas).
    ue = params["user_embeddings"][user_ids]
    se = params["show_embeddings"][show_ids]
    ref = (jnp.sum(ue * se, axis=1, keepdims=True)
           + params["user_bias"][user_ids]
           + params["show_bias"][show_ids]).squeeze()
    assert pred.shape == (batch,)
    assert jnp.allclose(pred, ref, atol=1e-5, rtol=1e-5)

    print("KERNEL_OK")
</pallas_src>

<mosaic_0001>
module attributes {stable_mosaic.version = 11 : i64} {
  func.func @mf_kernel(%arg0: i32, %arg1: memref<8xi32, #tpu.memory_space<smem>>, %arg2: memref<8xi32, #tpu.memory_space<smem>>, %arg3: memref<1x8xf32, #tpu.memory_space<vmem>>, %arg4: memref<1x8xf32, #tpu.memory_space<vmem>>, %arg5: memref<32x32xf32, #tpu.memory_space<any>>, %arg6: memref<48x32xf32, #tpu.memory_space<any>>, %arg7: memref<1x8xf32, #tpu.memory_space<vmem>>, %arg8: memref<8x32xf32, #tpu.memory_space<vmem>>, %arg9: memref<8x32xf32, #tpu.memory_space<vmem>>, %arg10: memref<2x!tpu.dma_semaphore, #tpu.memory_space<semaphore_mem>>) attributes {dimension_semantics = [#tpu.dimension_semantics<parallel>], iteration_bounds = array<i64: 1>, scalar_prefetch = 2 : i64, scratch_operands = 3 : i64, tpu.core_type = #tpu.core_type<tc>, window_params = [{transform_indices = @transform_0, window_bounds = array<i64: 1, 8>}, {transform_indices = @transform_1, window_bounds = array<i64: 1, 8>}, {}, {}, {transform_indices = @transform_4, window_bounds = array<i64: 1, 8>}]} {
    %c8_i32 = arith.constant 8 : i32
    %0 = arith.muli %arg0, %c8_i32 : i32
    %c0_i32 = arith.constant 0 : i32
    %c8_i32_0 = arith.constant 8 : i32
    %1 = arith.addi %c0_i32, %c8_i32_0 : i32
    %c1_i32 = arith.constant 1 : i32
    scf.for %arg11 = %c0_i32 to %1 step %c1_i32  : i32 {
      %c1_i32_14 = arith.constant 1 : i32
      %14 = arith.muli %arg11, %c1_i32_14 : i32
      %c0_i32_15 = arith.constant 0 : i32
      %15 = arith.addi %c0_i32_15, %14 : i32
      %16 = arith.addi %0, %15 : i32
      %17 = arith.index_cast %16 : i32 to index
      %18 = memref.load %arg1[%17] : memref<8xi32, #tpu.memory_space<smem>>
      %19 = arith.addi %0, %15 : i32
      %20 = arith.index_cast %19 : i32 to index
      %21 = memref.load %arg2[%20] : memref<8xi32, #tpu.memory_space<smem>>
      %c0_i32_16 = arith.constant 0 : i32
      %c0_i32_17 = arith.constant 0 : i32
      %22 = tpu.memref_slice %arg5[%18, %c0_i32_17] : memref<32x32xf32, #tpu.memory_space<any>> -> memref<1x32xf32, #tpu.memory_space<any>>
      %c0_i32_18 = arith.constant 0 : i32
      %23 = tpu.memref_slice %arg8[%15, %c0_i32_18] : memref<8x32xf32, #tpu.memory_space<vmem>> -> memref<1x32xf32, #tpu.memory_space<vmem>>
      %24 = tpu.memref_slice %arg10[%c0_i32_16] : memref<2x!tpu.dma_semaphore, #tpu.memory_space<semaphore_mem>> -> memref<1x!tpu.dma_semaphore, #tpu.memory_space<semaphore_mem>>
      %25 = tpu.memref_squeeze %24 : memref<1x!tpu.dma_semaphore, #tpu.memory_space<semaphore_mem>> -> memref<!tpu.dma_semaphore, #tpu.memory_space<semaphore_mem>>
      tpu.enqueue_dma source(%22 : memref<1x32xf32, #tpu.memory_space<any>>) target(%23 : memref<1x32xf32, #tpu.memory_space<vmem>>) target_semaphore(%25 : memref<!tpu.dma_semaphore, #tpu.memory_space<semaphore_mem>>)
      %c1_i32_19 = arith.constant 1 : i32
      %c0_i32_20 = arith.constant 0 : i32
      %26 = tpu.memref_slice %arg6[%21, %c0_i32_20] : memref<48x32xf32, #tpu.memory_space<any>> -> memref<1x32xf32, #tpu.memory_space<any>>
      %c0_i32_21 = arith.constant 0 : i32
      %27 = tpu.memref_slice %arg9[%15, %c0_i32_21] : memref<8x32xf32, #tpu.memory_space<vmem>> -> memref<1x32xf32, #tpu.memory_space<vmem>>
      %28 = tpu.memref_slice %arg10[%c1_i32_19] : memref<2x!tpu.dma_semaphore, #tpu.memory_space<semaphore_mem>> -> memref<1x!tpu.dma_semaphore, #tpu.memory_space<semaphore_mem>>
      %29 = tpu.memref_squeeze %28 : memref<1x!tpu.dma_semaphore, #tpu.memory_space<semaphore_mem>> -> memref<!tpu.dma_semaphore, #tpu.memory_space<semaphore_mem>>
      tpu.enqueue_dma source(%26 : memref<1x32xf32, #tpu.memory_space<any>>) target(%27 : memref<1x32xf32, #tpu.memory_space<vmem>>) target_semaphore(%29 : memref<!tpu.dma_semaphore, #tpu.memory_space<semaphore_mem>>)
    }
    %c8_i32_1 = arith.constant 8 : i32
    %c0_i32_2 = arith.constant 0 : i32
    %c8_i32_3 = arith.constant 8 : i32
    %2 = arith.addi %c0_i32_2, %c8_i32_3 : i32
    %c1_i32_4 = arith.constant 1 : i32
    scf.for %arg11 = %c0_i32_2 to %2 step %c1_i32_4  : i32 {
      %c0_i32_14 = arith.constant 0 : i32
      %c0_i32_15 = arith.constant 0 : i32
      %c0_i32_16 = arith.constant 0 : i32
      %14 = tpu.memref_slice %arg5[%c0_i32_15, %c0_i32_16] : memref<32x32xf32, #tpu.memory_space<any>> -> memref<1x32xf32, #tpu.memory_space<any>>
      %c0_i32_17 = arith.constant 0 : i32
      %c0_i32_18 = arith.constant 0 : i32
      %15 = tpu.memref_slice %arg8[%c0_i32_17, %c0_i32_18] : memref<8x32xf32, #tpu.memory_space<vmem>> -> memref<1x32xf32, #tpu.memory_space<vmem>>
      %16 = tpu.memref_slice %arg10[%c0_i32_14] : memref<2x!tpu.dma_semaphore, #tpu.memory_space<semaphore_mem>> -> memref<1x!tpu.dma_semaphore, #tpu.memory_space<semaphore_mem>>
      %17 = tpu.memref_squeeze %16 : memref<1x!tpu.dma_semaphore, #tpu.memory_space<semaphore_mem>> -> memref<!tpu.dma_semaphore, #tpu.memory_space<semaphore_mem>>
      tpu.wait_dma2 semaphore(%17 : memref<!tpu.dma_semaphore, #tpu.memory_space<semaphore_mem>>) src(%14 : memref<1x32xf32, #tpu.memory_space<any>>) dst(%15 : memref<1x32xf32, #tpu.memory_space<vmem>>)
      %c1_i32_19 = arith.constant 1 : i32
      %c0_i32_20 = arith.constant 0 : i32
      %c0_i32_21 = arith.constant 0 : i32
      %18 = tpu.memref_slice %arg6[%c0_i32_20, %c0_i32_21] : memref<48x32xf32, #tpu.memory_space<any>> -> memref<1x32xf32, #tpu.memory_space<any>>
      %c0_i32_22 = arith.constant 0 : i32
      %c0_i32_23 = arith.constant 0 : i32
      %19 = tpu.memref_slice %arg9[%c0_i32_22, %c0_i32_23] : memref<8x32xf32, #tpu.memory_space<vmem>> -> memref<1x32xf32, #tpu.memory_space<vmem>>
      %20 = tpu.memref_slice %arg10[%c1_i32_19] : memref<2x!tpu.dma_semaphore, #tpu.memory_space<semaphore_mem>> -> memref<1x!tpu.dma_semaphore, #tpu.memory_space<semaphore_mem>>
      %21 = tpu.memref_squeeze %20 : memref<1x!tpu.dma_semaphore, #tpu.memory_space<semaphore_mem>> -> memref<!tpu.dma_semaphore, #tpu.memory_space<semaphore_mem>>
      tpu.wait_dma2 semaphore(%21 : memref<!tpu.dma_semaphore, #tpu.memory_space<semaphore_mem>>) src(%18 : memref<1x32xf32, #tpu.memory_space<any>>) dst(%19 : memref<1x32xf32, #tpu.memory_space<vmem>>)
    }
    %c0 = arith.constant 0 : index
    %c0_5 = arith.constant 0 : index
    %3 = vector.load %arg8[%c0, %c0_5] : memref<8x32xf32, #tpu.memory_space<vmem>>, vector<8x32xf32>
    %c0_6 = arith.constant 0 : index
    %c0_7 = arith.constant 0 : index
    %4 = vector.load %arg9[%c0_6, %c0_7] : memref<8x32xf32, #tpu.memory_space<vmem>>, vector<8x32xf32>
    %5 = arith.mulf %3, %4 : vector<8x32xf32>
    %6 = tpu.transpose %5, [1, 0] : vector<8x32xf32> -> vector<32x8xf32>
    %cst = arith.constant dense<0.000000e+00> : vector<8xf32>
    %7 = vector.multi_reduction <add>, %6, %cst [0] : vector<32x8xf32> to vector<8xf32>
    %8 = vector.shape_cast %7 : vector<8xf32> to vector<1x8xf32>
    %c0_8 = arith.constant 0 : index
    %c0_9 = arith.constant 0 : index
    %9 = vector.load %arg3[%c0_8, %c0_9] : memref<1x8xf32, #tpu.memory_space<vmem>>, vector<1x8xf32>
    %10 = arith.addf %8, %9 : vector<1x8xf32>
    %c0_10 = arith.constant 0 : index
    %c0_11 = arith.constant 0 : index
    %11 = vector.load %arg4[%c0_10, %c0_11] : memref<1x8xf32, #tpu.memory_space<vmem>>, vector<1x8xf32>
    %12 = arith.addf %10, %11 : vector<1x8xf32>
    %c0_12 = arith.constant 0 : index
    %c0_13 = arith.constant 0 : index
    %13 = vector.load %arg7[%c0_12, %c0_13] : memref<1x8xf32, #tpu.memory_space<vmem>>, vector<1x8xf32>
    tpu.vector_store %arg7[%c0_12, %c0_13], %12 {strides = array<i32>} : memref<1x8xf32, #tpu.memory_space<vmem>>, vector<1x8xf32>,
    return
  }
  func.func @transform_0(%arg0: i32, %arg1: memref<8xi32, #tpu.memory_space<smem>>, %arg2: memref<8xi32, #tpu.memory_space<smem>>) -> (i32, i32) {
    %c0_i32 = arith.constant 0 : i32
    %c0_i32_0 = arith.constant 0 : i32
    return %c0_i32, %arg0 : i32, i32
  }
  func.func @transform_1(%arg0: i32, %arg1: memref<8xi32, #tpu.memory_space<smem>>, %arg2: memref<8xi32, #tpu.memory_space<smem>>) -> (i32, i32) {
    %c0_i32 = arith.constant 0 : i32
    %c0_i32_0 = arith.constant 0 : i32
    return %c0_i32, %arg0 : i32, i32
  }
  func.func @transform_4(%arg0: i32, %arg1: memref<8xi32, #tpu.memory_space<smem>>, %arg2: memref<8xi32, #tpu.memory_space<smem>>) -> (i32, i32) {
    %c0_i32 = arith.constant 0 : i32
    %c0_i32_0 = arith.constant 0 : i32
    return %c0_i32, %arg0 : i32, i32
  }
}

</mosaic_0001>

<llo_original>
// kernel: matrix_factorisation_forward.1
$region0: #{matrix_factorisation_forward.1}
  #allocation0 [shape = 'u32[]', space=smem, size = 0x4, offset = 0x4, fixed_abs, tag = 'smem constant byte address 0x4 - core index']
  #allocation1 [shape = 'u32[144,128]{1,0:T(1,128)}', space=vmem, size = 0x12000, scoped, tag = 'internal scratch']
  #allocation2 [shape = 'f32[8,32]{1,0:T(8,128)}', space=vmem, size = 0x1000, scoped, tag = 'scratch operand']
  #allocation3 [shape = 'f32[8,32]{1,0:T(8,128)}', space=vmem, size = 0x1000, scoped, tag = 'scratch operand']
  #allocation4 [shape = 's32[2]{0}', space=sflag, size = 0x8, scoped, tag = 'scratch operand']
  #allocation5 [shape = 's32[1]{0}', space=sflag, size = 0x4, scoped, tag = 'scoped memory for matrix_factorisation_forward.1']
  #allocation6 [shape = 'u8[512]{0}', space=smem, size = 0x200, scoped, tag = 'prefetched SMEM operand 0']
  #allocation7 [shape = 'u8[512]{0}', space=smem, size = 0x200, scoped, tag = 'prefetched SMEM operand 1']
  #allocation10 [shape = 's32[]', space=sflag, size = 0x4, offset = 0, fixed_abs, tag = 'sflag constant byte address 0x0 - dummy sync flag']
  #allocation11 [shape = 's32[]', space=sflag, size = 0x4, offset = 0, fixed_abs, tag = 'sflag constant byte address 0x0 - dummy sync flag']
  %s0 = inlined_call_operand.vmem [shape: s32[8], index: 0, kind: input, shape index: {}]
  %s1 = inlined_call_operand.vmem [shape: s32[8], index: 1, kind: input, shape index: {}]
  %s2 = inlined_call_operand.vmem [shape: f32[1,8], index: 2, kind: input, shape index: {}]
  %s3 = inlined_call_operand.vmem [shape: f32[1,8], index: 3, kind: input, shape index: {}]
  %s4 = inlined_call_operand.vmem [shape: f32[32,32], index: 4, kind: input, shape index: {}]
  %s5 = inlined_call_operand.vmem [shape: f32[48,32], index: 5, kind: input, shape index: {}]
  %s6 = inlined_call_operand.hbm [shape: f32[1,8], index: 6, kind: output, shape index: {}]
  %s7 = sld [smem:[#allocation0]]
  $region92: #{matrix_factorisation_forward.1} parent=0
    _
  %s9 = ssub.s32 1, %s7
  %s10 = scalar_select 0, %s9, %s7
  %s11 = sshll.u32 %s0, 4
  %s12 = int_to_ptr.vmem [resolvable:$true] %s11
  %14 = dma.vmem_to_smem %s12, 16, [#allocation6], [#allocation5]
  %s15 = sshll.u32 %s1, 4
  %s16 = int_to_ptr.vmem [resolvable:$true] %s15
  %18 = dma.vmem_to_smem %s16, 16, [#allocation7], [#allocation5]
  %19 = dma.done [#allocation5], 32
  %20 = sfence
  $region1: #{matrix_factorisation_forward.1} parent=0
    #allocation8 [shape = 'u8[512]{0}', space=vmem, size = 0x400, scoped, tag = 'output window, operand 0, single buffered']
    #allocation9 [shape = 's32[1]{0}', space=sflag, size = 0x4, scoped, tag = 'scoped memory for matrix_factorisation_forward.1']
    %21 = vsyncpa [#allocation9], 0
    // Predicated region
    $region2: #{matrix_factorisation_forward.1} parent=1 // pred_check
      _
    $region3: #{matrix_factorisation_forward.1} parent=1 // pred_check_branch
      %23 = sbr.rel (0) target = $region5
    $region4: #{matrix_factorisation_forward.1} parent=1 // pred_region
      _
    $region5: #{matrix_factorisation_forward.1} parent=1 // pred_fallthru
      _
    // Predicated region
    $region6: #{matrix_factorisation_forward.1} parent=1 // pred_check
      _
    $region7: #{matrix_factorisation_forward.1} parent=1 // pred_check_branch
      %25 = sbr.rel (0) target = $region9
    $region8: #{matrix_factorisation_forward.1} parent=1 // pred_region
      _
    $region9: #{matrix_factorisation_forward.1} parent=1 // pred_fallthru
      _
    %s26 = smul.u32 0, 8
    loop: start=0, step=1, limit=8
    $region10: #{matrix_factorisation_forward.1} parent=1 // loop_pre_header
      _
    $region11: #{matrix_factorisation_forward.1} parent=1 // loop_header
      %s28 = sphi 0, %s32
      %p29 = scmp.ge.s32.totalorder %s28, 8
    $region12: #{matrix_factorisation_forward.1} parent=1 // loop_header_branch
      %31 = sbr.rel (%p29) target = $region16
    $region13: #{matrix_factorisation_forward.1} parent=1 // loop_body
      %s33 = sadd.s32 %s26, %s28
      %s34 = sld [smem:[#allocation6 + %s33]]
      %s35 = sld [smem:[#allocation7 + %s33]]
      %s36 = scalar_lea.vmem %s4, %s34
      %s37 = scalar_lea.vmem [#allocation2], %s28
      %p39 = scmp.lt.u32.totalorder 1, 8
      %p40 = pneg %p39
      // Predicated region
      $region17: #{matrix_factorisation_forward.1} parent=13 // pred_check
        _
      $region18: #{matrix_factorisation_forward.1} parent=13 // pred_check_branch
        %42 = sbr.rel (%p39) target = $region20
      $region19: #{matrix_factorisation_forward.1} parent=13 // pred_region
        %s57 = sand.u32 1, 7
        %p58 = scmp.eq.s32.totalorder %s57, 0
        %p59 = pneg %p58
        // Predicated region
        $region32: #{matrix_factorisation_forward.1} parent=19 // pred_check
          _
        $region33: #{matrix_factorisation_forward.1} parent=19 // pred_check_branch
          %61 = sbr.rel (%p58) target = $region35
        $region34: #{matrix_factorisation_forward.1} parent=19 // pred_region
          %s62 = sand.u32 1, 7
          %s63 = ssub.s32 1, %s62
          %s64 = scalar_lea.vmem %s36, %s63
          %s65 = ssub.s32 1, %s62
          %s66 = scalar_lea.vmem %s37, %s65 [#allocation2]
          %s67 = sshllo.u32 0, %s62
          loop: start=0, step=1, limit=1
          $region36: #{matrix_factorisation_forward.1} parent=34 // loop_pre_header
            _
          $region37: #{matrix_factorisation_forward.1} parent=34 // loop_header
            %s69 = sphi 0, %s73
            %p70 = scmp.ge.s32.totalorder %s69, 1
            %s74 = sphi %s64, %s64
            %s75 = sphi %s66, %s66
          $region38: #{matrix_factorisation_forward.1} parent=34 // loop_header_branch
            %72 = sbr.rel (%p70) target = $region42
          $region39: #{matrix_factorisation_forward.1} parent=34 // loop_body
            %v76 = vld [vmem:[%s74] sm:%s67]
            %77 = vst [vmem:[%s75] sm:%s67] %v76
          $region40: #{matrix_factorisation_forward.1} parent=34 // loop_footer
            %s73 = sadd.s32 1, %s69
          $region41: #{matrix_factorisation_forward.1} parent=34 // loop_footer_branch
            %68 = sbr.rel target = $region37
          $region42: #{matrix_factorisation_forward.1} parent=34 // loop_exit
            _
        $region35: #{matrix_factorisation_forward.1} parent=19 // pred_fallthru
          _
      $region20: #{matrix_factorisation_forward.1} parent=13 // pred_fallthru
        _
      // Predicated region
      $region21: #{matrix_factorisation_forward.1} parent=13 // pred_check
        %p43 = pneg %p39
      $region22: #{matrix_factorisation_forward.1} parent=13 // pred_check_branch
        %45 = sbr.rel (%p43) target = $region24
      $region23: #{matrix_factorisation_forward.1} parent=13 // pred_region
        %s46 = sshllo.u32 0, 1
        loop: start=0, step=1, limit=1
        $region25: #{matrix_factorisation_forward.1} parent=23 // loop_pre_header
          _
        $region26: #{matrix_factorisation_forward.1} parent=23 // loop_header
          %s48 = sphi 0, %s52
          %p49 = scmp.ge.s32.totalorder %s48, 1
          %s53 = sphi %s36, %s36
          %s54 = sphi %s37, %s37
        $region27: #{matrix_factorisation_forward.1} parent=23 // loop_header_branch
          %51 = sbr.rel (%p49) target = $region31
        $region28: #{matrix_factorisation_forward.1} parent=23 // loop_body
          %v55 = vld [vmem:[%s53] sm:%s46]
          %56 = vst [vmem:[%s54] sm:%s46] %v55
        $region29: #{matrix_factorisation_forward.1} parent=23 // loop_footer
          %s52 = sadd.s32 1, %s48
        $region30: #{matrix_factorisation_forward.1} parent=23 // loop_footer_branch
          %47 = sbr.rel target = $region26
        $region31: #{matrix_factorisation_forward.1} parent=23 // loop_exit
          _
      $region24: #{matrix_factorisation_forward.1} parent=13 // pred_fallthru
        _
      // Predicated region
      $region43: #{matrix_factorisation_forward.1} parent=13 // pred_check
        _
      $region44: #{matrix_factorisation_forward.1} parent=13 // pred_check_branch
        %80 = sbr.rel (0) target = $region46
      $region45: #{matrix_factorisation_forward.1} parent=13 // pred_region
        %81 = vsyncadd [#allocation4], 16
      $region46: #{matrix_factorisation_forward.1} parent=13 // pred_fallthru
        _
      %s82 = scalar_lea.vmem %s5, %s35
      %s83 = scalar_lea.vmem [#allocation3], %s28
      %s84 = scalar_lea.sflag [#allocation4], 1
      %p86 = scmp.lt.u32.totalorder 1, 8
      %p87 = pneg %p86
      // Predicated region
      $region47: #{matrix_factorisation_forward.1} parent=13 // pred_check
        _
      $region48: #{matrix_factorisation_forward.1} parent=13 // pred_check_branch
        %89 = sbr.rel (%p86) target = $region50
      $region49: #{matrix_factorisation_forward.1} parent=13 // pred_region
        %s104 = sand.u32 1, 7
        %p105 = scmp.eq.s32.totalorder %s104, 0
        %p106 = pneg %p105
        // Predicated region
        $region62: #{matrix_factorisation_forward.1} parent=49 // pred_check
          _
        $region63: #{matrix_factorisation_forward.1} parent=49 // pred_check_branch
          %108 = sbr.rel (%p105) target = $region65
        $region64: #{matrix_factorisation_forward.1} parent=49 // pred_region
          %s109 = sand.u32 1, 7
          %s110 = ssub.s32 1, %s109
          %s111 = scalar_lea.vmem %s82, %s110
          %s112 = ssub.s32 1, %s109
          %s113 = scalar_lea.vmem %s83, %s112 [#allocation3]
          %s114 = sshllo.u32 0, %s109
          loop: start=0, step=1, limit=1
          $region66: #{matrix_factorisation_forward.1} parent=64 // loop_pre_header
            _
          $region67: #{matrix_factorisation_forward.1} parent=64 // loop_header
            %s116 = sphi 0, %s120
            %p117 = scmp.ge.s32.totalorder %s116, 1
            %s121 = sphi %s111, %s111
            %s122 = sphi %s113, %s113
          $region68: #{matrix_factorisation_forward.1} parent=64 // loop_header_branch
            %119 = sbr.rel (%p117) target = $region72
          $region69: #{matrix_factorisation_forward.1} parent=64 // loop_body
            %v123 = vld [vmem:[%s121] sm:%s114]
            %124 = vst [vmem:[%s122] sm:%s114] %v123
          $region70: #{matrix_factorisation_forward.1} parent=64 // loop_footer
            %s120 = sadd.s32 1, %s116
          $region71: #{matrix_factorisation_forward.1} parent=64 // loop_footer_branch
            %115 = sbr.rel target = $region67
          $region72: #{matrix_factorisation_forward.1} parent=64 // loop_exit
            _
        $region65: #{matrix_factorisation_forward.1} parent=49 // pred_fallthru
          _
      $region50: #{matrix_factorisation_forward.1} parent=13 // pred_fallthru
        _
      // Predicated region
      $region51: #{matrix_factorisation_forward.1} parent=13 // pred_check
        %p90 = pneg %p86
      $region52: #{matrix_factorisation_forward.1} parent=13 // pred_check_branch
        %92 = sbr.rel (%p90) target = $region54
      $region53: #{matrix_factorisation_forward.1} parent=13 // pred_region
        %s93 = sshllo.u32 0, 1
        loop: start=0, step=1, limit=1
        $region55: #{matrix_factorisation_forward.1} parent=53 // loop_pre_header
          _
        $region56: #{matrix_factorisation_forward.1} parent=53 // loop_header
          %s95 = sphi 0, %s99
          %p96 = scmp.ge.s32.totalorder %s95, 1
          %s100 = sphi %s82, %s82
          %s101 = sphi %s83, %s83
        $region57: #{matrix_factorisation_forward.1} parent=53 // loop_header_branch
          %98 = sbr.rel (%p96) target = $region61
        $region58: #{matrix_factorisation_forward.1} parent=53 // loop_body
          %v102 = vld [vmem:[%s100] sm:%s93]
          %103 = vst [vmem:[%s101] sm:%s93] %v102
        $region59: #{matrix_factorisation_forward.1} parent=53 // loop_footer
          %s99 = sadd.s32 1, %s95
        $region60: #{matrix_factorisation_forward.1} parent=53 // loop_footer_branch
          %94 = sbr.rel target = $region56
        $region61: #{matrix_factorisation_forward.1} parent=53 // loop_exit
          _
      $region54: #{matrix_factorisation_forward.1} parent=13 // pred_fallthru
        _
      // Predicated region
      $region73: #{matrix_factorisation_forward.1} parent=13 // pred_check
        _
      $region74: #{matrix_factorisation_forward.1} parent=13 // pred_check_branch
        %127 = sbr.rel (0) target = $region76
      $region75: #{matrix_factorisation_forward.1} parent=13 // pred_region
        %128 = vsyncadd %s84, 16
      $region76: #{matrix_factorisation_forward.1} parent=13 // pred_fallthru
        _
    $region14: #{matrix_factorisation_forward.1} parent=1 // loop_footer
      %s32 = sadd.s32 1, %s28
    $region15: #{matrix_factorisation_forward.1} parent=1 // loop_footer_branch
      %27 = sbr.rel target = $region11
    $region16: #{matrix_factorisation_forward.1} parent=1 // loop_exit
      _
    loop: start=0, step=1, limit=8
    $region77: #{matrix_factorisation_forward.1} parent=1 // loop_pre_header
      _
    $region78: #{matrix_factorisation_forward.1} parent=1 // loop_header
      %s130 = sphi 0, %s134
      %p131 = scmp.ge.s32.totalorder %s130, 8
    $region79: #{matrix_factorisation_forward.1} parent=1 // loop_header_branch
      %133 = sbr.rel (%p131) target = $region83
    $region80: #{matrix_factorisation_forward.1} parent=1 // loop_body
      %s135 = smul.u32 1, 1
      %s136 = sshll.u32 %s135, 4
      %137 = dma.done [#allocation4], %s136
      %s138 = scalar_lea.sflag [#allocation4], 1
      %s139 = sshll.u32 %s135, 4
      %140 = dma.done %s138, %s139
    $region81: #{matrix_factorisation_forward.1} parent=1 // loop_footer
      %s134 = sadd.s32 1, %s130
    $region82: #{matrix_factorisation_forward.1} parent=1 // loop_footer_branch
      %129 = sbr.rel target = $region78
    $region83: #{matrix_factorisation_forward.1} parent=1 // loop_exit
      _
    %v141 = vld [vmem:[#allocation2] sm:$0xff]
    %v142 = vld [vmem:[#allocation3] sm:$0xff]
    %v143 = vmul.f32 %v141, %v142
    %144 = vxpose.xlu0.b32.start [1/16] %v143, 128
    %145 = vxpose.xlu0.b32.cont [2/16] 0.0, 128
    %146 = vxpose.xlu0.b32.cont [3/16] 0.0, 128
    %147 = vxpose.xlu0.b32.cont [4/16] 0.0, 128
    %148 = vxpose.xlu0.b32.cont [5/16] 0.0, 128
    %149 = vxpose.xlu0.b32.cont [6/16] 0.0, 128
    %150 = vxpose.xlu0.b32.cont [7/16] 0.0, 128
    %151 = vxpose.xlu0.b32.cont [8/16] 0.0, 128
    %152 = vxpose.xlu0.b32.cont [9/16] 0.0, 128
    %153 = vxpose.xlu0.b32.cont [10/16] 0.0, 128
    %154 = vxpose.xlu0.b32.cont [11/16] 0.0, 128
    %155 = vxpose.xlu0.b32.cont [12/16] 0.0, 128
    %156 = vxpose.xlu0.b32.cont [13/16] 0.0, 128
    %157 = vxpose.xlu0.b32.cont [14/16] 0.0, 128
    %158 = vxpose.xlu0.b32.cont [15/16] 0.0, 128
    %159 = vxpose.xlu0.b32.end [16/16] 0.0, 128
    %v160 = vpop.trf.xlu0
    %v161 = vpop.trf.xlu0
    %v162 = vpop.trf.xlu0
    %v163 = vpop.trf.xlu0
    %v164 = vpop.trf.xlu0
    %v165 = vpop.trf.xlu0
    %v166 = vpop.trf.xlu0
    %v167 = vpop.trf.xlu0
    %v168 = vpop.trf.xlu0
    %v169 = vpop.trf.xlu0
    %v170 = vpop.trf.xlu0
    %v171 = vpop.trf.xlu0
    %v172 = vpop.trf.xlu0
    %v173 = vpop.trf.xlu0
    %v174 = vpop.trf.xlu0
    %v175 = vpop.trf.xlu0
    %vm176 = vcmask 64512
    %v177 = vsel %vm176, %v160, 0.0
    %v178 = vsel %vm176, %v161, 0.0
    %v179 = vadd.f32 %v177, %v178
    %v180 = vsel %vm176, %v162, 0.0
    %v181 = vadd.f32 %v179, %v180
    %v182 = vsel %vm176, %v163, 0.0
    %v183 = vadd.f32 %v181, %v182
    %v184 = vrot.slane %v183, 4
    %v185 = vadd.f32 %v183, %v184
    %v186 = vrot.slane %v185, 2
    %v187 = vadd.f32 %v185, %v186
    %v188 = vrot.slane %v187, 1
    %v189 = vadd.f32 %v187, %v188
    %v190 = vld [vmem:[%s2] sm:$0x1]
    %v191 = vadd.f32 %v189, %v190
    %v192 = vld [vmem:[%s3] sm:$0x1]
    %v193 = vadd.f32 %v191, %v192
    %vm194 = vcmask 57344
    %195 = vst.msk [vmem:[#allocation8] sm:$0x1] %vm194, %v193
    // Predicated region
    $region84: #{matrix_factorisation_forward.1} parent=1 // pred_check
      _
    $region85: #{matrix_factorisation_forward.1} parent=1 // pred_check_branch
      %197 = sbr.rel (0) target = $region87
    $region86: #{matrix_factorisation_forward.1} parent=1 // pred_region
      %s199 = ssub.s32 16, 16
      %200 = vsyncadd [#allocation9], %s199
      %s202 = sshll.u32 [#allocation8], 4
      %s203 = int_to_ptr.vmem [resolvable:$true] %s202
      %205 = dma.vmem_to_hbm [thread:$0]  %s203, 16, %s6, [#allocation9]
    $region87: #{matrix_factorisation_forward.1} parent=1 // pred_fallthru
      _
    // Predicated region
    $region88: #{matrix_factorisation_forward.1} parent=1 // pred_check
      _
    $region89: #{matrix_factorisation_forward.1} parent=1 // pred_check_branch
      %207 = sbr.rel (0) target = $region91
    $region90: #{matrix_factorisation_forward.1} parent=1 // pred_region
      %208 = dma.done [#allocation9], 16
    $region91: #{matrix_factorisation_forward.1} parent=1 // pred_fallthru
      _
    %209 = vsyncpa [#allocation9], 1
  %210 = vsyncmov [#allocation4]
  %s211 = vpop.sfrf %210
  %p212 = scmp.eq.s32.totalorder %s211, 0
  %p213 = pneg %p212
  %215 = shalt.err (%p213)
  %s216 = scalar_lea.sflag [#allocation4], 1
  %217 = vsyncmov %s216
  %s218 = vpop.sfrf %217
  %p219 = scmp.eq.s32.totalorder %s218, 0
  %p220 = pneg %p219
  %222 = shalt.err (%p220)

</llo_original>
